<compile_context>
chip_gen: v6e
topology: v6e:2x2x1
jax: 0.10.0
libtpu: 0.0.40
codegen_flags: <defaults>
</compile_context>

<pallas_src>
import functools
import math

import jax
import jax.numpy as jnp
from jax.experimental import pallas as pl
from jax.experimental.pallas import tpu as pltpu


def _tgcn_kernel(l_ref, x_ref, w_ref, b_ref, o_ref, *, batch, feat_c):
    """One row-tile of the batch-folded forward.

    l_ref : (tn, N)    bf16  Laplacian row tile
    x_ref : (N, B*C)   bf16  batch-folded concat(inputs, hidden): X'[n, b*C + c]
    w_ref : (C, O)     f32   feature-transform weights
    b_ref : (1, B*O)   f32   bias, tiled per batch
    o_ref : (tn, B*O)  f32   batch-folded output: out'[n, b*O + o]
    """
    # Single wide aggregation matmul: K = N, RHS width = B*C (lane-dense on the MXU),
    # bf16 inputs with f32 accumulation.
    ax = jnp.dot(l_ref[...], x_ref[...], preferred_element_type=jnp.float32)  # (tn, B*C)

    # Per-batch feature transform in f32: out_b = AX_b @ W.  `batch` is static -> unrolled;
    # the lane slices are static offsets, and the results are concatenated so the HBM store
    # is one lane-dense (tn, B*O) tile.
    w = w_ref[...]
    outs = []
    for b in range(batch):
        ax_b = ax[:, b * feat_c:(b + 1) * feat_c]                               # (tn, C)
        outs.append(jnp.dot(ax_b, w, preferred_element_type=jnp.float32))       # (tn, O)
    out = outs[0] if batch == 1 else jnp.concatenate(outs, axis=1)              # (tn, B*O)
    o_ref[...] = (out + b_ref[...]).astype(o_ref.dtype)


def tgcn_graph_conv(laplacian, inputs, hidden_state, weights, biases,
                    *, max_node_tile=256, vmem_limit_bytes=None):
    """Pallas forward for TGCNGraphConv.

    inputs:       (B, N, input_dim)   float32
    hidden_state: (B, N, hidden_dim)  float32
    laplacian:    (N, N)              float32
    weights:      (input_dim + hidden_dim, output_dim)
    biases:       (output_dim,)
    returns:      (B, N, output_dim)  float32
    """
    B, N, Din = inputs.shape
    Dh = hidden_state.shape[2]
    C = Din + Dh
    O = weights.shape[1]

    # ---- wrapper-side layout prep (cheap XLA ops, done once per call) --------------------
    # Batch-fold the RHS so the K=N matmul sees B*C output columns, and cast MXU operands
    # to bf16 here instead of per grid step inside the kernel.
    x_cat = jnp.concatenate([inputs, hidden_state], axis=2)                     # (B, N, C)
    x_fold = jnp.transpose(x_cat, (1, 0, 2)).reshape(N, B * C).astype(jnp.bfloat16)
    l_bf = laplacian.astype(jnp.bfloat16)                                       # (N, N)
    w_f32 = weights.astype(jnp.float32)                                         # (C, O)
    bias_fold = jnp.tile(biases.astype(jnp.float32), B).reshape(1, B * O)       # (1, B*O)

    # ---- node (row) tiling of L ----------------------------------------------------------
    if N <= max_node_tile:
        tn = N                      # single block: equals full dim, no (8,128) issue
    else:
        tn = max(8, (max_node_tile // 8) * 8)   # tiled: keep sublane-aligned
    n_tiles = pl.cdiv(N, tn)

    # Estimated resident VMEM (double-buffered specs) -> explicit limit with headroom,
    # clipped to the chip's physical capacity (64 MiB v7x, 128 MiB v5e/v6e).
    est_vmem = (2 * tn * N * 2            # L row tile, bf16, double-buffered
                + 2 * N * B * C * 2       # X', bf16 (constant index map -> DMA'd once)
                + 2 * tn * B * O * 4      # output tile, f32, double-buffered
                + (C * O + B * O) * 4     # weights + bias
                + (1 << 20))              # scratch slack
    if vmem_limit_bytes is None:
        try:
            cap = getattr(pltpu.get_tpu_info(), "vmem_capacity_bytes", 64 << 20)
        except Exception:  # pragma: no cover - conservative fallback off-TPU
            cap = 64 << 20
        vmem_limit_bytes = int(min(max(est_vmem, 32 << 20), int(cap * 0.9)))

    kernel = functools.partial(_tgcn_kernel, batch=B, feat_c=C)

    grid_spec = pltpu.PrefetchScalarGridSpec(
        num_scalar_prefetch=0,
        grid=(n_tiles,),
        in_specs=[
            pl.BlockSpec((tn, N), lambda i: (i, 0)),        # L row tile
            pl.BlockSpec((N, B * C), lambda i: (0, 0)),     # X' (resident, fetched once)
            pl.BlockSpec((C, O), lambda i: (0, 0)),         # W (shared)
            pl.BlockSpec((1, B * O), lambda i: (0, 0)),     # bias (tiled, shared)
        ],
        out_specs=pl.BlockSpec((tn, B * O), lambda i: (i, 0)),
    )

    flops = 2 * N * N * B * C + 2 * B * N * C * O
    bytes_accessed = (2 * N * N                # L, bf16, read once
                      + 2 * N * B * C          # X', bf16, read once
                      + 4 * (C * O + B * O)    # params, f32
                      + 4 * N * B * O)         # output, f32

    out2d = pl.pallas_call(
        kernel,
        out_shape=jax.ShapeDtypeStruct((N, B * O), jnp.float32),
        grid_spec=grid_spec,
        compiler_params=pltpu.CompilerParams(
            dimension_semantics=("parallel",),
            vmem_limit_bytes=vmem_limit_bytes),
        cost_estimate=pl.CostEstimate(
            flops=flops, transcendentals=0, bytes_accessed=bytes_accessed),
    )(l_bf, x_fold, w_f32, bias_fold)

    # Unfold the lane-packed batch: (N, B*O) -> (B, N, O).
    return out2d.reshape(N, B, O).transpose(1, 0, 2)


def get_laplacian_matrix(A):
    """D^{-1/2} (A + I) D^{-1/2}, matching the PyTorch reference (plain JAX, __init__-time)."""
    A = A + jnp.eye(A.shape[0], dtype=jnp.float32)
    row_sum = jnp.sum(A, axis=1)
    d_inv_sqrt = jnp.power(row_sum, -0.5)
    d_inv_sqrt = jnp.where(jnp.isinf(d_inv_sqrt), 0.0, d_inv_sqrt)
    degree = jnp.diag(d_inv_sqrt)
    return degree @ A @ degree


def xavier_uniform(key, shape, dtype=jnp.float32):
    fan_in, fan_out = shape
    bound = math.sqrt(6.0 / (fan_in + fan_out))
    return jax.random.uniform(key, shape, dtype, minval=-bound, maxval=bound)


if __name__ == "__main__":
    # Small, deterministic shapes consistent with the module's forward.
    batch_size = 2
    num_nodes = 16
    input_dim = 4
    hidden_dim = 32
    output_dim = 32
    bias_init_value = 0.0

    key = jax.random.PRNGKey(0)
    k_adj, k_w, k_in, k_h = jax.random.split(key, 4)

    # Deterministic synthetic symmetric 0/1 adjacency, no self loops (added in laplacian).
    adj_raw = (jax.random.uniform(k_adj, (num_nodes, num_nodes)) > 0.6).astype(jnp.float32)
    adj_mx = jnp.maximum(adj_raw, adj_raw.T) * (1.0 - jnp.eye(num_nodes, dtype=jnp.float32))

    laplacian = get_laplacian_matrix(adj_mx)

    # Parameters (deterministic, matching __init__ shapes and init scheme).
    weights = xavier_uniform(k_w, (input_dim + hidden_dim, output_dim))
    biases = jnp.full((output_dim,), bias_init_value, dtype=jnp.float32)

    inputs = jax.random.normal(k_in, (batch_size, num_nodes, input_dim), dtype=jnp.float32)
    hidden_state = jax.random.normal(k_h, (batch_size, num_nodes, hidden_dim), dtype=jnp.float32)

    out = tgcn_graph_conv(laplacian, inputs, hidden_state, weights, biases)
    out = jax.block_until_ready(out)

    # Pure-JAX f32 reference of the PyTorch forward.  The kernel feeds bf16 L / X to the MXU
    # (f32 accumulation, f32 feature transform), hence the looser tolerance.
    x_cat = jnp.concatenate([inputs, hidden_state], axis=2)
    ref = jnp.einsum("nm,bmc,co->bno", laplacian, x_cat, weights) + biases
    assert out.shape == (batch_size, num_nodes, output_dim)
    assert jnp.allclose(out, ref, atol=5e-2, rtol=5e-2), float(jnp.max(jnp.abs(out - ref)))

    print("KERNEL_OK")
</pallas_src>

<mosaic_0001>
module attributes {stable_mosaic.version = 11 : i64} {
  func.func @_tgcn_kernel(%arg0: i32, %arg1: memref<16x16xbf16, #tpu.memory_space<vmem>>, %arg2: memref<16x72xbf16, #tpu.memory_space<vmem>>, %arg3: memref<36x32xf32, #tpu.memory_space<vmem>>, %arg4: memref<1x64xf32, #tpu.memory_space<vmem>>, %arg5: memref<16x64xf32, #tpu.memory_space<vmem>>) attributes {dimension_semantics = [#tpu.dimension_semantics<parallel>], iteration_bounds = array<i64: 1>, scalar_prefetch = 0 : i64, scratch_operands = 0 : i64, tpu.core_type = #tpu.core_type<tc>, window_params = [{transform_indices = @transform_0, window_bounds = array<i64: 16, 16>}, {pipeline_mode = #tpu.pipeline_mode<synchronous>, transform_indices = @transform_1, window_bounds = array<i64: 16, 72>}, {pipeline_mode = #tpu.pipeline_mode<synchronous>, transform_indices = @transform_2, window_bounds = array<i64: 36, 32>}, {pipeline_mode = #tpu.pipeline_mode<synchronous>, transform_indices = @transform_3, window_bounds = array<i64: 1, 64>}, {transform_indices = @transform_4, window_bounds = array<i64: 16, 64>}]} {
    %c0 = arith.constant 0 : index
    %c0_0 = arith.constant 0 : index
    %0 = vector.load %arg1[%c0, %c0_0] : memref<16x16xbf16, #tpu.memory_space<vmem>>, vector<16x16xbf16>
    %c0_1 = arith.constant 0 : index
    %c0_2 = arith.constant 0 : index
    %1 = vector.load %arg2[%c0_1, %c0_2] : memref<16x72xbf16, #tpu.memory_space<vmem>>, vector<16x72xbf16>
    %cst = arith.constant dense<0.000000e+00> : vector<16x72xf32>
    %2 = tpu.matmul %0, %1, %cst {dimension_numbers = #tpu.dot_dimension_numbers<[1], [0], [0], [1], [0, 0, 1, 1], [], []>} : vector<16x16xbf16>, vector<16x72xbf16>, vector<16x72xf32> -> vector<16x72xf32>
    %c0_3 = arith.constant 0 : index
    %c0_4 = arith.constant 0 : index
    %3 = vector.load %arg3[%c0_3, %c0_4] : memref<36x32xf32, #tpu.memory_space<vmem>>, vector<36x32xf32>
    %4 = vector.extract_strided_slice %2 {offsets = [0, 0], sizes = [16, 36], strides = [1, 1]} : vector<16x72xf32> to vector<16x36xf32>
    %cst_5 = arith.constant dense<0.000000e+00> : vector<16x32xf32>
    %5 = tpu.matmul %4, %3, %cst_5 {dimension_numbers = #tpu.dot_dimension_numbers<[1], [0], [0], [1], [0, 0, 1, 1], [], []>} : vector<16x36xf32>, vector<36x32xf32>, vector<16x32xf32> -> vector<16x32xf32>
    %6 = vector.extract_strided_slice %2 {offsets = [0, 36], sizes = [16, 36], strides = [1, 1]} : vector<16x72xf32> to vector<16x36xf32>
    %cst_6 = arith.constant dense<0.000000e+00> : vector<16x32xf32>
    %7 = tpu.matmul %6, %3, %cst_6 {dimension_numbers = #tpu.dot_dimension_numbers<[1], [0], [0], [1], [0, 0, 1, 1], [], []>} : vector<16x36xf32>, vector<36x32xf32>, vector<16x32xf32> -> vector<16x32xf32>
    %8 = tpu.concatenate %5, %7 in 1 : vector<16x32xf32>, vector<16x32xf32> -> vector<16x64xf32>
    %c0_7 = arith.constant 0 : index
    %c0_8 = arith.constant 0 : index
    %9 = vector.load %arg4[%c0_7, %c0_8] : memref<1x64xf32, #tpu.memory_space<vmem>>, vector<1x64xf32>
    %10 = vector.broadcast %9 : vector<1x64xf32> to vector<16x64xf32>
    %11 = arith.addf %8, %10 : vector<16x64xf32>
    %c0_9 = arith.constant 0 : index
    %c0_10 = arith.constant 0 : index
    %12 = vector.load %arg5[%c0_9, %c0_10] : memref<16x64xf32, #tpu.memory_space<vmem>>, vector<16x64xf32>
    tpu.vector_store %arg5[%c0_9, %c0_10], %11 {strides = array<i32>} : memref<16x64xf32, #tpu.memory_space<vmem>>, vector<16x64xf32>,
    return
  }
  func.func @transform_0(%arg0: i32) -> (i32, i32) {
    %c0_i32 = arith.constant 0 : i32
    %c0_i32_0 = arith.constant 0 : i32
    return %arg0, %c0_i32 : i32, i32
  }
  func.func @transform_1(%arg0: i32) -> (i32, i32) {
    %c0_i32 = arith.constant 0 : i32
    %c0_i32_0 = arith.constant 0 : i32
    %c0_i32_1 = arith.constant 0 : i32
    return %c0_i32, %c0_i32_0 : i32, i32
  }
  func.func @transform_2(%arg0: i32) -> (i32, i32) {
    %c0_i32 = arith.constant 0 : i32
    %c0_i32_0 = arith.constant 0 : i32
    %c0_i32_1 = arith.constant 0 : i32
    return %c0_i32, %c0_i32_0 : i32, i32
  }
  func.func @transform_3(%arg0: i32) -> (i32, i32) {
    %c0_i32 = arith.constant 0 : i32
    %c0_i32_0 = arith.constant 0 : i32
    %c0_i32_1 = arith.constant 0 : i32
    return %c0_i32, %c0_i32_0 : i32, i32
  }
  func.func @transform_4(%arg0: i32) -> (i32, i32) {
    %c0_i32 = arith.constant 0 : i32
    %c0_i32_0 = arith.constant 0 : i32
    return %arg0, %c0_i32 : i32, i32
  }
}

</mosaic_0001>

<llo_original>
// kernel: tpu_custom_call.1
$region0: #{tpu_custom_call.1}
  #allocation0 [shape = 'u32[]', space=smem, size = 0x4, offset = 0x4, fixed_abs, tag = 'smem constant byte address 0x4 - core index']
  #allocation1 [shape = 'u32[144,128]{1,0:T(1,128)}', space=vmem, size = 0x12000, scoped, tag = 'internal scratch']
  %s0 = inlined_call_operand.vmem [shape: bf16[16,16], index: 0, kind: input, shape index: {}]
  %s1 = inlined_call_operand.vmem [shape: bf16[16,72], index: 1, kind: input, shape index: {}]
  %s2 = inlined_call_operand.vmem [shape: f32[36,32], index: 2, kind: input, shape index: {}]
  %s3 = inlined_call_operand.vmem [shape: f32[1,64], index: 3, kind: input, shape index: {}]
  %s4 = inlined_call_operand.hbm [shape: f32[16,64], index: 4, kind: output, shape index: {}]
  %s5 = sld [smem:[#allocation0]]
  $region26: #{tpu_custom_call.1} parent=0
    _
  %s7 = ssub.s32 1, %s5
  %s8 = scalar_select 0, %s7, %s5
  $region1: #{tpu_custom_call.1} parent=0
    #allocation2 [shape = 'u8[8192]{0}', space=vmem, size = 0x2000, scoped, tag = 'output window, operand 0, single buffered']
    #allocation3 [shape = 's32[1]{0}', space=sflag, size = 0x4, scoped, tag = 'scoped memory for tpu_custom_call.1']
    %9 = vsyncpa [#allocation3], 0
    // Predicated region
    $region2: #{tpu_custom_call.1} parent=1 // pred_check
      _
    $region3: #{tpu_custom_call.1} parent=1 // pred_check_branch
      %11 = sbr.rel (0) target = $region5
    $region4: #{tpu_custom_call.1} parent=1 // pred_region
      _
    $region5: #{tpu_custom_call.1} parent=1 // pred_fallthru
      _
    // Predicated region
    $region6: #{tpu_custom_call.1} parent=1 // pred_check
      _
    $region7: #{tpu_custom_call.1} parent=1 // pred_check_branch
      %13 = sbr.rel (0) target = $region9
    $region8: #{tpu_custom_call.1} parent=1 // pred_region
      _
    $region9: #{tpu_custom_call.1} parent=1 // pred_fallthru
      _
    // Predicated region
    $region10: #{tpu_custom_call.1} parent=1 // pred_check
      _
    $region11: #{tpu_custom_call.1} parent=1 // pred_check_branch
      %15 = sbr.rel (0) target = $region13
    $region12: #{tpu_custom_call.1} parent=1 // pred_region
      _
    $region13: #{tpu_custom_call.1} parent=1 // pred_fallthru
      _
    // Predicated region
    $region14: #{tpu_custom_call.1} parent=1 // pred_check
      _
    $region15: #{tpu_custom_call.1} parent=1 // pred_check_branch
      %17 = sbr.rel (0) target = $region17
    $region16: #{tpu_custom_call.1} parent=1 // pred_region
      _
    $region17: #{tpu_custom_call.1} parent=1 // pred_fallthru
      _
    %v19 = vld [vmem:[%s0] sm:$0xf]
    %v20 = vld [vmem:[%s0 + $0x4] sm:$0xf]
    %v21 = vld [vmem:[%s1] sm:$0xf]
    %v22 = vld [vmem:[%s1 + $0x4] sm:$0xf]
    %v25 = vunpack.c.l.b16 %v19
    %v26 = vunpack.c.l.b16 %v20
    %v27 = vpack.c.b16 %v26, %v25
    %v30 = vunpack.c.l.b16 %v21
    %v31 = vunpack.c.l.b16 %v22
    %v32 = vpack.c.b16 %v31, %v30
    %vm34 = vcmask 130048
    %v36 = vsel %vm34, %v27, 0
    %38 = vmatprep.subr.bf16.mxu0 0
    %39 = vmatpush1.bf16.msra.mxu0 0
    %40 = vmatprep.subr.bf16.mxu0 0
    %41 = vmatpush1.bf16.msra.mxu0 0
    %42 = vmatprep.subr.bf16.mxu0 0
    %43 = vmatpush1.bf16.msra.mxu0 0
    %44 = vmatprep.subr.bf16.mxu0 0
    %45 = vmatpush1.bf16.msra.mxu0 0
    %46 = vmatprep.subr.bf16.mxu0 0
    %47 = vmatpush1.bf16.msra.mxu0 0
    %48 = vmatprep.subr.bf16.mxu0 0
    %49 = vmatpush1.bf16.msra.mxu0 0
    %50 = vmatprep.subr.bf16.mxu0 0
    %51 = vmatpush1.bf16.msra.mxu0 0
    %52 = vmatprep.subr.bf16.mxu0 0
    %53 = vmatpush1.bf16.msra.mxu0 %v32
    %54 = vmatprep.subr.bf16.mxu0 0
    %55 = vmatpush2.bf16.msra.mxu0 0
    %56 = vmatprep.subr.bf16.mxu0 0
    %57 = vmatpush2.bf16.msra.mxu0 0
    %58 = vmatprep.subr.bf16.mxu0 0
    %59 = vmatpush2.bf16.msra.mxu0 0
    %60 = vmatprep.subr.bf16.mxu0 0
    %61 = vmatpush2.bf16.msra.mxu0 0
    %62 = vmatprep.subr.bf16.mxu0 0
    %63 = vmatpush2.bf16.msra.mxu0 0
    %64 = vmatprep.subr.bf16.mxu0 0
    %65 = vmatpush2.bf16.msra.mxu0 0
    %66 = vmatprep.subr.bf16.mxu0 0
    %67 = vmatpush2.bf16.msra.mxu0 0
    %68 = vmatprep.subr.bf16.mxu0 0
    %69 = vmatpush2.bf16.msra.mxu0 0
    %70 = vmatprep.mubr.bf16.mxu0 0
    %71 = vmatmul.mubr.bf16.gmra.mxu0 %v36
    %v72 = vpop.f32.mrf.mxu0
    %v73 = vadd.f32 0.0, %v72
    %v74 = vpop.f32.mrf.mxu0
    %v75 = vpop.f32.mrf.mxu0
    %v76 = vadd.f32 0.0, %v75
    %v77 = vpop.f32.mrf.mxu0
    %78 = vdwg.mxu0
    %v79 = vld [vmem:[%s2] sm:$0xff]
    %v80 = vld [vmem:[%s2 + $0x8] sm:$0xff]
    %v81 = vld [vmem:[%s2 + $0x10] sm:$0xff]
    %v82 = vld [vmem:[%s2 + $0x18] sm:$0xff]
    %v83 = vld [vmem:[%s2 + $0x20] sm:$0xf]
    %vm84 = vcmask 293888
    %v86 = vsel %vm84, %v73, 0
    %v89 = vsel %vm84, %v76, 0
    %vm91 = vcmask 1043456
    %v93 = vsel %vm91, %v83, 0
    %95 = vmatprep.subr.mxu0 0.0
    %96 = vmatpush1.msra.mxu0 0.0
    %97 = vmatprep.subr.mxu0 0.0
    %98 = vmatpush1.msra.mxu0 0.0
    %99 = vmatprep.subr.mxu0 0.0
    %100 = vmatpush1.msra.mxu0 0.0
    %101 = vmatprep.subr.mxu0 0.0
    %102 = vmatpush1.msra.mxu0 0.0
    %103 = vmatprep.subr.mxu0 0.0
    %104 = vmatpush1.msra.mxu0 0.0
    %105 = vmatprep.subr.mxu0 0.0
    %106 = vmatpush1.msra.mxu0 0.0
    %107 = vmatprep.subr.mxu0 0.0
    %108 = vmatpush1.msra.mxu0 0.0
    %109 = vmatprep.subr.mxu0 0.0
    %110 = vmatpush1.msra.mxu0 0.0
    %111 = vmatprep.subr.mxu0 0.0
    %112 = vmatpush1.msra.mxu0 0.0
    %113 = vmatprep.subr.mxu0 0.0
    %114 = vmatpush1.msra.mxu0 0.0
    %115 = vmatprep.subr.mxu0 0.0
    %116 = vmatpush1.msra.mxu0 0.0
    %117 = vmatprep.subr.mxu0 0.0
    %118 = vmatpush1.msra.mxu0 %v93
    %119 = vmatprep.subr.mxu0 0.0
    %120 = vmatpush1.msra.mxu0 %v82
    %121 = vmatprep.subr.mxu0 0.0
    %122 = vmatpush1.msra.mxu0 %v81
    %123 = vmatprep.subr.mxu0 0.0
    %124 = vmatpush1.msra.mxu0 %v80
    %125 = vmatprep.subr.mxu0 0.0
    %126 = vmatpush1.msra.mxu0 %v79
    %127 = vmatprep.subr.mxu0 0.0
    %128 = vmatpush2.msra.mxu0 0.0
    %129 = vmatprep.subr.mxu0 0.0
    %130 = vmatpush2.msra.mxu0 0.0
    %131 = vmatprep.subr.mxu0 0.0
    %132 = vmatpush2.msra.mxu0 0.0
    %133 = vmatprep.subr.mxu0 0.0
    %134 = vmatpush2.msra.mxu0 0.0
    %135 = vmatprep.subr.mxu0 0.0
    %136 = vmatpush2.msra.mxu0 0.0
    %137 = vmatprep.subr.mxu0 0.0
    %138 = vmatpush2.msra.mxu0 0.0
    %139 = vmatprep.subr.mxu0 0.0
    %140 = vmatpush2.msra.mxu0 0.0
    %141 = vmatprep.subr.mxu0 0.0
    %142 = vmatpush2.msra.mxu0 0.0
    %143 = vmatprep.subr.mxu0 0.0
    %144 = vmatpush2.msra.mxu0 0.0
    %145 = vmatprep.subr.mxu0 0.0
    %146 = vmatpush2.msra.mxu0 0.0
    %147 = vmatprep.subr.mxu0 0.0
    %148 = vmatpush2.msra.mxu0 0.0
    %149 = vmatprep.subr.mxu0 0.0
    %150 = vmatpush2.msra.mxu0 0.0
    %151 = vmatprep.subr.mxu0 0.0
    %152 = vmatpush2.msra.mxu0 0.0
    %153 = vmatprep.subr.mxu0 0.0
    %154 = vmatpush2.msra.mxu0 0.0
    %155 = vmatprep.subr.mxu0 0.0
    %156 = vmatpush2.msra.mxu0 0.0
    %157 = vmatprep.subr.mxu0 0.0
    %158 = vmatpush2.msra.mxu0 0.0
    %159 = vmatprep.mubr.f32.mxu0 0.0
    %160 = vmatmul.mubr.f32.gmra.mxu0 %v86
    %v161 = vpop.f32.mrf.mxu0
    %v162 = vadd.f32 0.0, %v161
    %v163 = vpop.f32.mrf.mxu0
    %164 = vmatprep.mubr.f32.mxu0 0.0
    %165 = vmatmul.mubr.f32.gmra.mxu0 %v89
    %v166 = vpop.f32.mrf.mxu0
    %v167 = vadd.f32 0.0, %v166
    %v168 = vpop.f32.mrf.mxu0
    %169 = vdwg.mxu0
    %170 = vrot.lane.b32.xlu0 %v73, 92
    %v171 = vpop.permute.xlu0 %170
    %172 = vrot.lane.b32.xlu0 %v76, 92
    %v173 = vpop.permute.xlu0 %172
    %v174 = vsel %vm84, %v171, 0
    %v176 = vsel %vm84, %v173, 0
    %178 = vmatprep.subr.mxu0 0.0
    %179 = vmatpush1.msra.mxu0 0.0
    %180 = vmatprep.subr.mxu0 0.0
    %181 = vmatpush1.msra.mxu0 0.0
    %182 = vmatprep.subr.mxu0 0.0
    %183 = vmatpush1.msra.mxu0 0.0
    %184 = vmatprep.subr.mxu0 0.0
    %185 = vmatpush1.msra.mxu0 0.0
    %186 = vmatprep.subr.mxu0 0.0
    %187 = vmatpush1.msra.mxu0 0.0
    %188 = vmatprep.subr.mxu0 0.0
    %189 = vmatpush1.msra.mxu0 0.0
    %190 = vmatprep.subr.mxu0 0.0
    %191 = vmatpush1.msra.mxu0 0.0
    %192 = vmatprep.subr.mxu0 0.0
    %193 = vmatpush1.msra.mxu0 0.0
    %194 = vmatprep.subr.mxu0 0.0
    %195 = vmatpush1.msra.mxu0 0.0
    %196 = vmatprep.subr.mxu0 0.0
    %197 = vmatpush1.msra.mxu0 0.0
    %198 = vmatprep.subr.mxu0 0.0
    %199 = vmatpush1.msra.mxu0 0.0
    %200 = vmatprep.subr.mxu0 0.0
    %201 = vmatpush1.msra.mxu0 %v93
    %202 = vmatprep.subr.mxu0 0.0
    %203 = vmatpush1.msra.mxu0 %v82
    %204 = vmatprep.subr.mxu0 0.0
    %205 = vmatpush1.msra.mxu0 %v81
    %206 = vmatprep.subr.mxu0 0.0
    %207 = vmatpush1.msra.mxu0 %v80
    %208 = vmatprep.subr.mxu0 0.0
    %209 = vmatpush1.msra.mxu0 %v79
    %210 = vmatprep.subr.mxu0 0.0
    %211 = vmatpush2.msra.mxu0 0.0
    %212 = vmatprep.subr.mxu0 0.0
    %213 = vmatpush2.msra.mxu0 0.0
    %214 = vmatprep.subr.mxu0 0.0
    %215 = vmatpush2.msra.mxu0 0.0
    %216 = vmatprep.subr.mxu0 0.0
    %217 = vmatpush2.msra.mxu0 0.0
    %218 = vmatprep.subr.mxu0 0.0
    %219 = vmatpush2.msra.mxu0 0.0
    %220 = vmatprep.subr.mxu0 0.0
    %221 = vmatpush2.msra.mxu0 0.0
    %222 = vmatprep.subr.mxu0 0.0
    %223 = vmatpush2.msra.mxu0 0.0
    %224 = vmatprep.subr.mxu0 0.0
    %225 = vmatpush2.msra.mxu0 0.0
    %226 = vmatprep.subr.mxu0 0.0
    %227 = vmatpush2.msra.mxu0 0.0
    %228 = vmatprep.subr.mxu0 0.0
    %229 = vmatpush2.msra.mxu0 0.0
    %230 = vmatprep.subr.mxu0 0.0
    %231 = vmatpush2.msra.mxu0 0.0
    %232 = vmatprep.subr.mxu0 0.0
    %233 = vmatpush2.msra.mxu0 0.0
    %234 = vmatprep.subr.mxu0 0.0
    %235 = vmatpush2.msra.mxu0 0.0
    %236 = vmatprep.subr.mxu0 0.0
    %237 = vmatpush2.msra.mxu0 0.0
    %238 = vmatprep.subr.mxu0 0.0
    %239 = vmatpush2.msra.mxu0 0.0
    %240 = vmatprep.subr.mxu0 0.0
    %241 = vmatpush2.msra.mxu0 0.0
    %242 = vmatprep.mubr.f32.mxu0 0.0
    %243 = vmatmul.mubr.f32.gmra.mxu0 %v174
    %v244 = vpop.f32.mrf.mxu0
    %v245 = vadd.f32 0.0, %v244
    %v246 = vpop.f32.mrf.mxu0
    %247 = vmatprep.mubr.f32.mxu0 0.0
    %248 = vmatmul.mubr.f32.gmra.mxu0 %v176
    %v249 = vpop.f32.mrf.mxu0
    %v250 = vadd.f32 0.0, %v249
    %v251 = vpop.f32.mrf.mxu0
    %252 = vdwg.mxu0
    %255 = vrot.lane.b32.xlu0 %v245, 32
    %v256 = vpop.permute.xlu0 %255
    %257 = vrot.lane.b32.xlu0 %v250, 32
    %v258 = vpop.permute.xlu0 %257
    %vm261 = vcmask 261120
    %v262 = vsel %vm261, %v162, %v256
    %v263 = vsel %vm261, %v167, %v258
    %v264 = vld [vmem:[%s3] sm:$0x1]
    %v266 = vlaneseq
    %v267 = vshrl.u32 %v266, 7
    %v268 = vsub.s32 0, %v267
    %v269 = vrot.slane %v264, %v268
    %v271 = vadd.f32 %v262, %v269
    %v272 = vadd.f32 %v263, %v269
    %vm273 = vcmask 523264
    %274 = vst.msk [vmem:[#allocation2] sm:$0xff] %vm273, %v271
    %275 = vst.msk [vmem:[#allocation2 + $0x8] sm:$0xff] %vm273, %v272
    // Predicated region
    $region18: #{tpu_custom_call.1} parent=1 // pred_check
      _
    $region19: #{tpu_custom_call.1} parent=1 // pred_check_branch
      %277 = sbr.rel (0) target = $region21
    $region20: #{tpu_custom_call.1} parent=1 // pred_region
      %s279 = ssub.s32 256, 256
      %280 = vsyncadd [#allocation3], %s279
      %s281 = sshll.u32 [#allocation2], 4
      %s282 = int_to_ptr.vmem [resolvable:$true] %s281
      %287 = dma.vmem_to_hbm [thread:$0]  %s282, 256, %s4, [#allocation3], 128, 128, 8
    $region21: #{tpu_custom_call.1} parent=1 // pred_fallthru
      _
    // Predicated region
    $region22: #{tpu_custom_call.1} parent=1 // pred_check
      _
    $region23: #{tpu_custom_call.1} parent=1 // pred_check_branch
      %289 = sbr.rel (0) target = $region25
    $region24: #{tpu_custom_call.1} parent=1 // pred_region
      %290 = dma.done [#allocation3], 256
    $region25: #{tpu_custom_call.1} parent=1 // pred_fallthru
      _
    %291 = vsyncpa [#allocation3], 1

</llo_original>
